<compile_context>
chip_gen: v7x
topology: tpu7x:2x2x1
jax: 0.10.0
libtpu: 0.0.40
codegen_flags: <defaults>
</compile_context>

<pallas_src>
import functools

import jax
import jax.numpy as jnp
import numpy as np
from jax import lax
from jax.experimental import pallas as pl
from jax.experimental.pallas import tpu as pltpu


def _round_up(n: int, m: int) -> int:
    return ((n + m - 1) // m) * m


def _choose_tiles(B: int, T: int, itemsize: int, target_bytes: int):
    """Pick (Bt, Tt) so each sublane-padded VMEM buffer is ~target_bytes."""
    Tt_cap = _round_up(T, 128)
    Bt = B if B <= 8 else 8                       # full-dim or multiple of 8
    rows_padded = _round_up(Bt, 8)                # VMEM pads sublanes to 8
    q = max(target_bytes // (rows_padded * itemsize), 128)
    Tt = min(Tt_cap, max(128, (q // 128) * 128))
    # If T limits the tile and batch is large, widen the batch tile instead.
    if B > 8 and Bt * Tt * itemsize < target_bytes:
        grow = max(target_bytes // (Tt * itemsize), 8)
        Bt = int(min(_round_up(B, 8), _round_up(grow, 8)))
    return int(Bt), int(Tt)


def _preemphasis_kernel(x_ref, bnd_ref, o_ref, *, coef: float):
    """One (Bt, Tt) tile. bnd_ref holds the 128 samples ending at this tile's
    left boundary (block 0 for the first time tile)."""
    ti = pl.program_id(1)

    x = x_ref[...].astype(jnp.float32)            # (Bt, Tt)
    bnd = bnd_ref[...].astype(jnp.float32)        # (Bt, 128)

    # Previous in-tile sample via an XLU lane rotate (no shifted VMEM copies).
    prev = pltpu.roll(x, shift=1, axis=1)         # prev[:, j] = x[:, j-1], j>=1

    # Column 0: previous tile's last sample, or reflect value x[:, 1] on the
    # very first time tile.
    col0 = jnp.where(ti == 0, bnd[:, 1:2], bnd[:, 127:128])        # (Bt, 1)
    lane = lax.broadcasted_iota(jnp.int32, x.shape, 1)
    prev = jnp.where(lane == 0, col0, prev)

    # Single unmasked, lane-dense store of the whole tile.
    o_ref[...] = (x - coef * prev).astype(o_ref.dtype)


def pre_emphasis(x: jax.Array, coef: float = 0.97, *,
                 batch_tile: int | None = None,
                 time_tile: int | None = None,
                 target_buffer_bytes: int = 4 * 1024 * 1024) -> jax.Array:
    """Pre-emphasis filter. x: (B, T) -> (B, T), same dtype as input."""
    assert x.ndim == 2
    B, T = x.shape
    assert T >= 2, "reflect padding needs at least two samples"

    itemsize = jnp.dtype(x.dtype).itemsize
    Bt, Tt = _choose_tiles(B, T, itemsize, target_buffer_bytes)
    if time_tile is not None:
        Tt = min(_round_up(time_tile, 128), _round_up(T, 128))
    if batch_tile is not None:
        Bt = batch_tile if batch_tile == B else _round_up(batch_tile, 8)
        Bt = min(Bt, _round_up(B, 8)) if Bt != B else Bt

    grid = (pl.cdiv(B, Bt), pl.cdiv(T, Tt))
    nblk = Tt // 128  # number of 128-lane blocks per time tile

    kernel = functools.partial(_preemphasis_kernel, coef=float(coef))

    return pl.pallas_call(
        kernel,
        out_shape=jax.ShapeDtypeStruct((B, T), x.dtype),
        grid=grid,
        in_specs=[
            # Main tile.
            pl.BlockSpec((Bt, Tt), lambda bi, ti: (bi, ti)),
            # Boundary re-read: the 128 samples ending at element ti*Tt
            # (previous tile's tail); block 0 for ti == 0 (reflect sample).
            pl.BlockSpec((Bt, 128),
                         lambda bi, ti: (bi, jnp.maximum(ti * nblk - 1, 0))),
        ],
        out_specs=pl.BlockSpec((Bt, Tt), lambda bi, ti: (bi, ti)),
        compiler_params=pltpu.CompilerParams(
            dimension_semantics=("parallel", "parallel"),
            vmem_limit_bytes=32 * 1024 * 1024,
        ),
        cost_estimate=pl.CostEstimate(
            flops=2 * B * T,
            transcendentals=0,
            bytes_accessed=2 * B * T * itemsize + B * grid[1] * 128 * itemsize,
        ),
    )(x, x)


def pre_emphasis_ref(x: jax.Array, coef: float) -> jax.Array:
    # Pure-JAX reference for correctness checking.
    xf = x.astype(jnp.float32)
    prev = jnp.concatenate([xf[:, 1:2], xf[:, :-1]], axis=1)
    return xf - coef * prev


if __name__ == "__main__":
    coef = 0.97
    key = jax.random.PRNGKey(0)

    # Small shapes that still exercise: ragged time tail, multi-tile time axis
    # with boundary re-read, ragged/multi-tile batch axis, exact multiples,
    # and in-kernel dtype handling (bf16).
    cases = [
        dict(B=2, T=2000, dtype=jnp.float32),                                  # 1x1 grid, ragged T
        dict(B=3, T=1000, dtype=jnp.float32, time_tile=256),                   # multi time tiles + ragged tail
        dict(B=12, T=520, dtype=jnp.float32, batch_tile=8, time_tile=256),     # ragged batch + both axes tiled
        dict(B=2, T=8192, dtype=jnp.float32, time_tile=1024),                  # exact multiples
        dict(B=4, T=2600, dtype=jnp.bfloat16, time_tile=512),                  # bf16 in / bf16 out
    ]

    for cfg in cases:
        key, sub = jax.random.split(key)
        x = jax.random.normal(sub, (cfg["B"], cfg["T"]), dtype=jnp.float32)
        x = x.astype(cfg["dtype"])
        kwargs = {k: cfg[k] for k in ("batch_tile", "time_tile") if k in cfg}
        y = jax.block_until_ready(pre_emphasis(x, coef, **kwargs))
        y_ref = pre_emphasis_ref(x, coef)
        assert y.shape == x.shape and y.dtype == x.dtype
        tol = 1e-5 if cfg["dtype"] == jnp.float32 else 5e-2
        assert np.allclose(np.asarray(y, dtype=np.float32), np.asarray(y_ref),
                           atol=tol, rtol=tol), f"mismatch vs reference for {cfg}"

    print("KERNEL_OK")
</pallas_src>

<mosaic_0001>
module attributes {stable_mosaic.version = 11 : i64} {
  func.func @_preemphasis_kernel(%arg0: i32, %arg1: i32, %arg2: memref<2x2048xf32, #tpu.memory_space<vmem>>, %arg3: memref<2x128xf32, #tpu.memory_space<vmem>>, %arg4: memref<2x2048xf32, #tpu.memory_space<vmem>>) attributes {dimension_semantics = [#tpu.dimension_semantics<parallel>, #tpu.dimension_semantics<parallel>], iteration_bounds = array<i64: 1, 1>, scalar_prefetch = 0 : i64, scratch_operands = 0 : i64, tpu.core_type = #tpu.core_type<tc>, window_params = [{transform_indices = @transform_0, window_bounds = array<i64: 2, 2048>}, {transform_indices = @transform_1, window_bounds = array<i64: 2, 128>}, {transform_indices = @transform_2, window_bounds = array<i64: 2, 2048>}]} {
    %c0 = arith.constant 0 : index
    %c0_0 = arith.constant 0 : index
    %0 = vector.load %arg2[%c0, %c0_0] : memref<2x2048xf32, #tpu.memory_space<vmem>>, vector<2x2048xf32>
    %c0_1 = arith.constant 0 : index
    %c0_2 = arith.constant 0 : index
    %1 = vector.load %arg3[%c0_1, %c0_2] : memref<2x128xf32, #tpu.memory_space<vmem>>, vector<2x128xf32>
    %c1_i32 = arith.constant 1 : i32
    %2 = tpu.dynamic_rotate %0 by %c1_i32 dim 1 : vector<2x2048xf32>, i32 -> vector<2x2048xf32>
    %c0_i32 = arith.constant 0 : i32
    %3 = arith.cmpi eq, %arg1, %c0_i32 : i32
    %4 = vector.extract_strided_slice %1 {offsets = [0, 1], sizes = [2, 1], strides = [1, 1]} : vector<2x128xf32> to vector<2x1xf32>
    %5 = vector.extract_strided_slice %1 {offsets = [0, 127], sizes = [2, 1], strides = [1, 1]} : vector<2x128xf32> to vector<2x1xf32>
    %6 = arith.select %3, %4, %5 : vector<2x1xf32>
    %7 = tpu.iota {dimensions = array<i32: 1>} : vector<2x2048xi32>
    %c0_i32_3 = arith.constant 0 : i32
    %8 = vector.broadcast %c0_i32_3 : i32 to vector<2x2048xi32>
    %9 = arith.cmpi eq, %7, %8 : vector<2x2048xi32>
    %10 = vector.shape_cast %6 : vector<2x1xf32> to vector<2x1xf32>
    %11 = vector.broadcast %10 : vector<2x1xf32> to vector<2x2048xf32>
    %12 = arith.select %9, %11, %2 : vector<2x2048xi1>, vector<2x2048xf32>
    %cst = arith.constant 9.700000e-01 : f32
    %13 = vector.broadcast %cst : f32 to vector<2x2048xf32>
    %14 = arith.mulf %13, %12 : vector<2x2048xf32>
    %15 = arith.subf %0, %14 : vector<2x2048xf32>
    %c0_4 = arith.constant 0 : index
    %c0_5 = arith.constant 0 : index
    %16 = vector.load %arg4[%c0_4, %c0_5] : memref<2x2048xf32, #tpu.memory_space<vmem>>, vector<2x2048xf32>
    tpu.vector_store %arg4[%c0_4, %c0_5], %15 {strides = array<i32>} : memref<2x2048xf32, #tpu.memory_space<vmem>>, vector<2x2048xf32>,
    return
  }
  func.func @transform_0(%arg0: i32, %arg1: i32) -> (i32, i32) {
    %c0_i32 = arith.constant 0 : i32
    return %arg0, %arg1 : i32, i32
  }
  func.func @transform_1(%arg0: i32, %arg1: i32) -> (i32, i32) {
    %c16_i32 = arith.constant 16 : i32
    %0 = arith.muli %arg1, %c16_i32 : i32
    %c1_i32 = arith.constant 1 : i32
    %1 = arith.subi %0, %c1_i32 : i32
    %c0_i32 = arith.constant 0 : i32
    %2 = arith.maxsi %1, %c0_i32 : i32
    %c0_i32_0 = arith.constant 0 : i32
    return %arg0, %2 : i32, i32
  }
  func.func @transform_2(%arg0: i32, %arg1: i32) -> (i32, i32) {
    %c0_i32 = arith.constant 0 : i32
    return %arg0, %arg1 : i32, i32
  }
}

</mosaic_0001>

<llo_original>
// kernel: tpu_custom_call.1
$region0: #{tpu_custom_call.1}
  #allocation0 [shape = 'u32[]', space=smem, size = 0x4, offset = 0x4, fixed_abs, tag = 'smem constant byte address 0x4 - core index']
  #allocation1 [shape = 'u32[144,128]{1,0:T(1,128)}', space=vmem, size = 0x12000, scoped, tag = 'internal scratch']
  %s0 = inlined_call_operand.hbm [shape: f32[2,2000], index: 0, kind: input, shape index: {}]
  %s1 = inlined_call_operand.hbm [shape: f32[2,2000], index: 1, kind: input, shape index: {}]
  %s2 = inlined_call_operand.hbm [shape: f32[2,2000], index: 2, kind: output, shape index: {}]
  %s3 = sld [smem:[#allocation0]]
  $region26: #{tpu_custom_call.1} parent=0
    _
  %s5 = ssub.s32 1, %s3
  %s6 = scalar_select 0, %s5, %s3
  $region1: #{tpu_custom_call.1} parent=0
    #allocation2 [shape = 'u8[16384]{0}', space=vmem, size = 0x4000, scoped, tag = 'input window, operand 0, single buffered']
    #allocation3 [shape = 's32[1]{0}', space=sflag, size = 0x4, scoped, tag = 'scoped memory for tpu_custom_call.1']
    #allocation4 [shape = 's32[1]{0}', space=sflag, size = 0x4, scoped, tag = 'scoped memory for tpu_custom_call.1']
    #allocation5 [shape = 'u8[1024]{0}', space=vmem, size = 0x400, scoped, tag = 'input window, operand 1, single buffered']
    #allocation6 [shape = 's32[1]{0}', space=sflag, size = 0x4, scoped, tag = 'scoped memory for tpu_custom_call.1']
    #allocation7 [shape = 'u8[16384]{0}', space=vmem, size = 0x4000, scoped, tag = 'output window, operand 0, single buffered']
    %7 = vsyncpa [#allocation3], 0
    %8 = vsyncpa [#allocation6], 0
    %9 = vsyncpa [#allocation4], 0
    // Predicated region
    $region2: #{tpu_custom_call.1} parent=1 // pred_check
      _
    $region3: #{tpu_custom_call.1} parent=1 // pred_check_branch
      %11 = sbr.rel (0) target = $region5
    $region4: #{tpu_custom_call.1} parent=1 // pred_region
      %s13 = ssub.s32 512, 512
      %14 = vsyncadd [#allocation3], %s13
      %s16 = sshll.u32 [#allocation2], 4
      %s17 = int_to_ptr.vmem [resolvable:$true] %s16
      %19 = dma.hbm_to_vmem [thread:$0]  %s0, 512, %s17, [#allocation3]
    $region5: #{tpu_custom_call.1} parent=1 // pred_fallthru
      _
    // Predicated region
    $region6: #{tpu_custom_call.1} parent=1 // pred_check
      _
    $region7: #{tpu_custom_call.1} parent=1 // pred_check_branch
      %21 = sbr.rel (0) target = $region9
    $region8: #{tpu_custom_call.1} parent=1 // pred_region
      %s22 = smul.u32 0, 16
      %s23 = ssub.s32 %s22, 1
      %p24 = scmp.gt.s32.totalorder %s23, 0
      %s25 = scalar_select %p24, %s23, 0
      %s27 = ssub.s32 32, 32
      %28 = vsyncadd [#allocation6], %s27
      %s29 = smul.addr %s25, 32
      %s30 = scalar_lea.hbm %s1, %s29
      %s32 = sshll.u32 [#allocation5], 4
      %s33 = int_to_ptr.vmem [resolvable:$true] %s32
      %35 = dma.hbm_to_vmem [thread:$0]  %s30, 32, %s33, [#allocation6]
    $region9: #{tpu_custom_call.1} parent=1 // pred_fallthru
      _
    // Predicated region
    $region10: #{tpu_custom_call.1} parent=1 // pred_check
      _
    $region11: #{tpu_custom_call.1} parent=1 // pred_check_branch
      %37 = sbr.rel (0) target = $region13
    $region12: #{tpu_custom_call.1} parent=1 // pred_region
      %38 = dma.done [#allocation3], 512
    $region13: #{tpu_custom_call.1} parent=1 // pred_fallthru
      _
    // Predicated region
    $region14: #{tpu_custom_call.1} parent=1 // pred_check
      _
    $region15: #{tpu_custom_call.1} parent=1 // pred_check_branch
      %40 = sbr.rel (0) target = $region17
    $region16: #{tpu_custom_call.1} parent=1 // pred_region
      %41 = dma.done [#allocation6], 32
    $region17: #{tpu_custom_call.1} parent=1 // pred_fallthru
      _
    %s42 = smul.u32 0, 16
    %s43 = ssub.s32 %s42, 1
    %p44 = scmp.gt.s32.totalorder %s43, 0
    %s45 = scalar_select %p44, %s43, 0
    %v46 = vld [vmem:[#allocation2] sm:$0xff]
    %v47 = vld [vmem:[#allocation2 + $0x8] sm:$0xff]
    %v48 = vld [vmem:[#allocation2 + $0x10] sm:$0xff]
    %v49 = vld [vmem:[#allocation2 + $0x18] sm:$0xff]
    %v50 = vld [vmem:[#allocation5] sm:$0x3]
    %v55 = vcombine.high %v46, %v46
    %v57 = vunpack.c.l.s4 1983009808
    %v58 = vunpack.c.0.s8 %v57
    %v59 = vlaneseq
    %v60 = vshrl.u32 %v59, 7
    %v61 = vsub.s32 %v58, %v60
    %v62 = vrot.slane %v46, %v61
    %v64 = vunpack.c.l.s4 1983009808
    %v65 = vunpack.c.0.s8 %v64
    %v66 = vlaneseq
    %v67 = vshrl.u32 %v66, 7
    %v68 = vsub.s32 %v65, %v67
    %v69 = vrot.slane %v55, %v68
    %v70 = vcombine.high %v62, %v62
    %v71 = vcombine.high %v69, %v69
    %v72 = vcombine.high %v47, %v47
    %v74 = vunpack.c.l.s4 1983009808
    %v75 = vunpack.c.0.s8 %v74
    %v76 = vlaneseq
    %v77 = vshrl.u32 %v76, 7
    %v78 = vsub.s32 %v75, %v77
    %v79 = vrot.slane %v47, %v78
    %v81 = vunpack.c.l.s4 1983009808
    %v82 = vunpack.c.0.s8 %v81
    %v83 = vlaneseq
    %v84 = vshrl.u32 %v83, 7
    %v85 = vsub.s32 %v82, %v84
    %v86 = vrot.slane %v72, %v85
    %v87 = vcombine.high %v79, %v79
    %v88 = vcombine.high %v86, %v86
    %v89 = vcombine.high %v48, %v48
    %v91 = vunpack.c.l.s4 1983009808
    %v92 = vunpack.c.0.s8 %v91
    %v93 = vlaneseq
    %v94 = vshrl.u32 %v93, 7
    %v95 = vsub.s32 %v92, %v94
    %v96 = vrot.slane %v48, %v95
    %v98 = vunpack.c.l.s4 1983009808
    %v99 = vunpack.c.0.s8 %v98
    %v100 = vlaneseq
    %v101 = vshrl.u32 %v100, 7
    %v102 = vsub.s32 %v99, %v101
    %v103 = vrot.slane %v89, %v102
    %v104 = vcombine.high %v96, %v96
    %v105 = vcombine.high %v103, %v103
    %v106 = vcombine.high %v49, %v49
    %v108 = vunpack.c.l.s4 1983009808
    %v109 = vunpack.c.0.s8 %v108
    %v110 = vlaneseq
    %v111 = vshrl.u32 %v110, 7
    %v112 = vsub.s32 %v109, %v111
    %v113 = vrot.slane %v49, %v112
    %v115 = vunpack.c.l.s4 1983009808
    %v116 = vunpack.c.0.s8 %v115
    %v117 = vlaneseq
    %v118 = vshrl.u32 %v117, 7
    %v119 = vsub.s32 %v116, %v118
    %v120 = vrot.slane %v106, %v119
    %v121 = vcombine.high %v113, %v113
    %v122 = vcombine.high %v120, %v120
    %139 = vrot.lane.b32.xlu0 %v62, 1
    %v140 = vpop.permute.xlu0 %139
    %141 = vrot.lane.b32.xlu0 %v70, 1
    %v142 = vpop.permute.xlu0 %141
    %143 = vrot.lane.b32.xlu0 %v69, 1
    %v144 = vpop.permute.xlu0 %143
    %145 = vrot.lane.b32.xlu0 %v71, 1
    %v146 = vpop.permute.xlu0 %145
    %147 = vrot.lane.b32.xlu0 %v79, 1
    %v148 = vpop.permute.xlu0 %147
    %149 = vrot.lane.b32.xlu0 %v87, 1
    %v150 = vpop.permute.xlu0 %149
    %151 = vrot.lane.b32.xlu0 %v86, 1
    %v152 = vpop.permute.xlu0 %151
    %153 = vrot.lane.b32.xlu0 %v88, 1
    %v154 = vpop.permute.xlu0 %153
    %155 = vrot.lane.b32.xlu0 %v96, 1
    %v156 = vpop.permute.xlu0 %155
    %157 = vrot.lane.b32.xlu0 %v104, 1
    %v158 = vpop.permute.xlu0 %157
    %159 = vrot.lane.b32.xlu0 %v103, 1
    %v160 = vpop.permute.xlu0 %159
    %161 = vrot.lane.b32.xlu0 %v105, 1
    %v162 = vpop.permute.xlu0 %161
    %163 = vrot.lane.b32.xlu0 %v113, 1
    %v164 = vpop.permute.xlu0 %163
    %165 = vrot.lane.b32.xlu0 %v121, 1
    %v166 = vpop.permute.xlu0 %165
    %167 = vrot.lane.b32.xlu0 %v120, 1
    %v168 = vpop.permute.xlu0 %167
    %169 = vrot.lane.b32.xlu0 %v122, 1
    %v170 = vpop.permute.xlu0 %169
    %v171 = vlaneseq
    %v172 = vand.u32 %v171, 127
    %vm173 = vcmp.lt.s32.totalorder %v172, 1
    %v174 = vsel %vm173, %v168, %v170
    %v175 = vsel %vm173, %v166, %v168
    %v176 = vsel %vm173, %v164, %v166
    %v177 = vsel %vm173, %v162, %v164
    %v178 = vsel %vm173, %v160, %v162
    %v179 = vsel %vm173, %v158, %v160
    %v180 = vsel %vm173, %v156, %v158
    %v181 = vsel %vm173, %v154, %v156
    %v182 = vsel %vm173, %v152, %v154
    %v183 = vsel %vm173, %v150, %v152
    %v184 = vsel %vm173, %v148, %v150
    %v185 = vsel %vm173, %v146, %v148
    %v186 = vsel %vm173, %v144, %v146
    %v187 = vsel %vm173, %v142, %v144
    %v188 = vsel %vm173, %v140, %v142
    %v189 = vsel %vm173, %v170, %v140
    %p190 = scmp.eq.s32.totalorder 0, 0
    %s191 = scalar_select %p190, 1, 0
    %v192 = vstv %s191
    %vm193 = vcmp.eq.s32.totalorder %v192, 1
    %195 = vrot.lane.b32.xlu0 %v50, 2
    %v196 = vpop.permute.xlu0 %195
    %v198 = vsel %vm193, %v50, %v196
    %v199 = vadd.s32 %v172, 128
    %v200 = vadd.s32 %v172, 256
    %v201 = vadd.s32 %v172, 384
    %v202 = vadd.s32 %v172, 512
    %v203 = vadd.s32 %v172, 640
    %v204 = vadd.s32 %v172, 768
    %v205 = vadd.s32 %v172, 896
    %v206 = vadd.s32 %v172, 1024
    %v207 = vadd.s32 %v172, 1152
    %v208 = vadd.s32 %v172, 1280
    %v209 = vadd.s32 %v172, 1408
    %v210 = vadd.s32 %v172, 1536
    %v211 = vadd.s32 %v172, 1664
    %v212 = vadd.s32 %v172, 1792
    %v213 = vadd.s32 %v172, 1920
    %vm214 = vcmp.eq.s32.totalorder %v172, 0
    %vm215 = vcmp.eq.s32.totalorder %v199, 0
    %vm216 = vcmp.eq.s32.totalorder %v200, 0
    %vm217 = vcmp.eq.s32.totalorder %v201, 0
    %vm218 = vcmp.eq.s32.totalorder %v202, 0
    %vm219 = vcmp.eq.s32.totalorder %v203, 0
    %vm220 = vcmp.eq.s32.totalorder %v204, 0
    %vm221 = vcmp.eq.s32.totalorder %v205, 0
    %vm222 = vcmp.eq.s32.totalorder %v206, 0
    %vm223 = vcmp.eq.s32.totalorder %v207, 0
    %vm224 = vcmp.eq.s32.totalorder %v208, 0
    %vm225 = vcmp.eq.s32.totalorder %v209, 0
    %vm226 = vcmp.eq.s32.totalorder %v210, 0
    %vm227 = vcmp.eq.s32.totalorder %v211, 0
    %vm228 = vcmp.eq.s32.totalorder %v212, 0
    %vm229 = vcmp.eq.s32.totalorder %v213, 0
    %231 = vset.pattern.permute.xlu0 1
    %232 = vperm.xlu0 %231, %v198
    %v233 = vpop.permute.xlu0 %232
    %v235 = vsel %vm214, %v233, %v189
    %v236 = vsel %vm215, %v233, %v188
    %v237 = vsel %vm216, %v233, %v187
    %v238 = vsel %vm217, %v233, %v186
    %v239 = vsel %vm218, %v233, %v185
    %v240 = vsel %vm219, %v233, %v184
    %v241 = vsel %vm220, %v233, %v183
    %v242 = vsel %vm221, %v233, %v182
    %v243 = vsel %vm222, %v233, %v181
    %v244 = vsel %vm223, %v233, %v180
    %v245 = vsel %vm224, %v233, %v179
    %v246 = vsel %vm225, %v233, %v178
    %v247 = vsel %vm226, %v233, %v177
    %v248 = vsel %vm227, %v233, %v176
    %v249 = vsel %vm228, %v233, %v175
    %v250 = vsel %vm229, %v233, %v174
    %v251 = vmul.f32 %v235, 0.97
    %v252 = vmul.f32 %v236, 0.97
    %v253 = vmul.f32 %v237, 0.97
    %v254 = vmul.f32 %v238, 0.97
    %v255 = vmul.f32 %v239, 0.97
    %v256 = vmul.f32 %v240, 0.97
    %v257 = vmul.f32 %v241, 0.97
    %v258 = vmul.f32 %v242, 0.97
    %v259 = vmul.f32 %v243, 0.97
    %v260 = vmul.f32 %v244, 0.97
    %v261 = vmul.f32 %v245, 0.97
    %v262 = vmul.f32 %v246, 0.97
    %v263 = vmul.f32 %v247, 0.97
    %v264 = vmul.f32 %v248, 0.97
    %v265 = vmul.f32 %v249, 0.97
    %v266 = vmul.f32 %v250, 0.97
    %v283 = vcombine.low %v251, %v252
    %v284 = vcombine.low %v253, %v254
    %v286 = vunpack.c.l.s4 1983009808
    %v287 = vunpack.c.0.s8 %v286
    %v288 = vlaneseq
    %v289 = vshrl.u32 %v288, 7
    %v290 = vsub.s32 %v287, %v289
    %v291 = vrot.slane %v283, %v290
    %v293 = vunpack.c.l.s4 1983009808
    %v294 = vunpack.c.0.s8 %v293
    %v295 = vlaneseq
    %v296 = vshrl.u32 %v295, 7
    %v297 = vsub.s32 %v294, %v296
    %v298 = vrot.slane %v284, %v297
    %v299 = vcombine.low %v291, %v298
    %v300 = vcombine.low %v255, %v256
    %v301 = vcombine.low %v257, %v258
    %v303 = vunpack.c.l.s4 1983009808
    %v304 = vunpack.c.0.s8 %v303
    %v305 = vlaneseq
    %v306 = vshrl.u32 %v305, 7
    %v307 = vsub.s32 %v304, %v306
    %v308 = vrot.slane %v300, %v307
    %v310 = vunpack.c.l.s4 1983009808
    %v311 = vunpack.c.0.s8 %v310
    %v312 = vlaneseq
    %v313 = vshrl.u32 %v312, 7
    %v314 = vsub.s32 %v311, %v313
    %v315 = vrot.slane %v301, %v314
    %v316 = vcombine.low %v308, %v315
    %v317 = vcombine.low %v259, %v260
    %v318 = vcombine.low %v261, %v262
    %v320 = vunpack.c.l.s4 1983009808
    %v321 = vunpack.c.0.s8 %v320
    %v322 = vlaneseq
    %v323 = vshrl.u32 %v322, 7
    %v324 = vsub.s32 %v321, %v323
    %v325 = vrot.slane %v317, %v324
    %v327 = vunpack.c.l.s4 1983009808
    %v328 = vunpack.c.0.s8 %v327
    %v329 = vlaneseq
    %v330 = vshrl.u32 %v329, 7
    %v331 = vsub.s32 %v328, %v330
    %v332 = vrot.slane %v318, %v331
    %v333 = vcombine.low %v325, %v332
    %v334 = vcombine.low %v263, %v264
    %v335 = vcombine.low %v265, %v266
    %v337 = vunpack.c.l.s4 1983009808
    %v338 = vunpack.c.0.s8 %v337
    %v339 = vlaneseq
    %v340 = vshrl.u32 %v339, 7
    %v341 = vsub.s32 %v338, %v340
    %v342 = vrot.slane %v334, %v341
    %v344 = vunpack.c.l.s4 1983009808
    %v345 = vunpack.c.0.s8 %v344
    %v346 = vlaneseq
    %v347 = vshrl.u32 %v346, 7
    %v348 = vsub.s32 %v345, %v347
    %v349 = vrot.slane %v335, %v348
    %v350 = vcombine.low %v342, %v349
    %v355 = vsub.f32 %v46, %v299
    %v356 = vsub.f32 %v47, %v316
    %v357 = vsub.f32 %v48, %v333
    %v358 = vsub.f32 %v49, %v350
    %359 = vst [vmem:[#allocation7] sm:$0xff] %v355
    %360 = vst [vmem:[#allocation7 + $0x8] sm:$0xff] %v356
    %361 = vst [vmem:[#allocation7 + $0x10] sm:$0xff] %v357
    %362 = vst [vmem:[#allocation7 + $0x18] sm:$0xff] %v358
    // Predicated region
    $region18: #{tpu_custom_call.1} parent=1 // pred_check
      _
    $region19: #{tpu_custom_call.1} parent=1 // pred_check_branch
      %364 = sbr.rel (0) target = $region21
    $region20: #{tpu_custom_call.1} parent=1 // pred_region
      %s366 = ssub.s32 512, 512
      %367 = vsyncadd [#allocation4], %s366
      %s369 = sshll.u32 [#allocation7], 4
      %s370 = int_to_ptr.vmem [resolvable:$true] %s369
      %372 = dma.vmem_to_hbm [thread:$0]  %s370, 512, %s2, [#allocation4]
    $region21: #{tpu_custom_call.1} parent=1 // pred_fallthru
      _
    // Predicated region
    $region22: #{tpu_custom_call.1} parent=1 // pred_check
      _
    $region23: #{tpu_custom_call.1} parent=1 // pred_check_branch
      %374 = sbr.rel (0) target = $region25
    $region24: #{tpu_custom_call.1} parent=1 // pred_region
      %375 = dma.done [#allocation4], 512
    $region25: #{tpu_custom_call.1} parent=1 // pred_fallthru
      _
    %376 = vsyncpa [#allocation3], 1
    %377 = vsyncpa [#allocation6], 1
    %378 = vsyncpa [#allocation4], 1

</llo_original>
